<compile_context>
chip_gen: v5e
topology: v5e:2x2
jax: 0.10.0
libtpu: 0.0.40
codegen_flags: <defaults>
</compile_context>

<pallas_src>
import functools

import jax
import jax.numpy as jnp
from jax.experimental import pallas as pl
from jax.experimental.pallas import tpu as pltpu

ALPHA = 0.25
GAMMA = 2.0
LANES = 128
MAX_BLOCK_BYTES = 8 * 1024 * 1024   # combined x+t bytes per pipeline step


def _pow_gamma(x, gamma):
    """Specialize small integer gamma to VPU multiplies (avoid EUP pow)."""
    g = float(gamma)
    if g == 2.0:
        return x * x
    if g == 1.0:
        return x
    if g == int(g) and 0 <= int(g) <= 8:
        gi = int(g)
        if gi == 0:
            return jnp.ones_like(x)
        y = x
        for _ in range(gi - 1):
            y = y * x
        return y
    return x ** g


def _focal_loss_kernel(x_ref, t_ref, out_ref, *, gamma, binary_targets,
                       steps_per_shard, nblocks, tail_rows, block_rows,
                       has_phantom):
    i = pl.program_id(1)   # reduction step within shard ("arbitrary" axis)

    # Output block (1, 1, C) is revisited across the inner axis -> per-shard
    # lane-wise accumulator resident in VMEM.
    @pl.when(i == 0)
    def _init():
        out_ref[...] = jnp.zeros_like(out_ref)

    p = x_ref[...].astype(jnp.float32)
    t = t_ref[...].astype(jnp.float32)

    if binary_targets:
        # Exact for hard {0,1} targets: pt = p if t==1 else 1-p.
        # Single transcendental per element (one log) instead of three.
        pt = jnp.where(t >= 0.5, p, 1.0 - p)
        bce = -jnp.maximum(jnp.log(pt), -100.0)
    else:
        # BCELoss(reduction='none'): -(t*log(p) + (1-t)*log(1-p)); each log
        # term clamped at -100 (matches PyTorch's internal clamp).
        log_p = jnp.maximum(jnp.log(p), -100.0)
        log_1mp = jnp.maximum(jnp.log(1.0 - p), -100.0)
        bce = -(t * log_p + (1.0 - t) * log_1mp)
        pt = jnp.exp(-bce)

    f = _pow_gamma(1.0 - pt, gamma) * bce   # alpha and /N hoisted to epilogue

    def accumulate(vals):
        out_ref[...] += jnp.sum(vals, axis=0, keepdims=True)[None]

    has_partial_tail = tail_rows != block_rows   # static Python bool
    if not has_partial_tail and not has_phantom:
        # Fully regular tiling: no masking work on any step.
        accumulate(f)
    else:
        gb = pl.program_id(0) * steps_per_shard + i
        last_clean = nblocks - 1 if has_partial_tail else nblocks

        @pl.when(gb < last_clean)
        def _steady():
            accumulate(f)

        if has_partial_tail:
            @pl.when(gb == nblocks - 1)
            def _tail():
                # Rows past the end of the array hold unfetched VMEM garbage;
                # `where` is a select, so NaN/Inf cannot leak through.
                row = jax.lax.broadcasted_iota(jnp.int32, f.shape, 0)
                accumulate(jnp.where(row < tail_rows, f, 0.0))
        # Phantom steps (gb >= nblocks, from shard rounding) contribute nothing.


def _view_2d(total_n, shape):
    """Zero-copy 2-D (rows, cols) factorization of the flattened input."""
    if total_n % LANES == 0:
        return total_n // LANES, LANES
    # Ragged numel: build the lane dim from trailing dims of the original
    # shape (exact product, so the reshape stays a contiguous bitcast).
    cols = 1
    for d in reversed(shape):
        cols *= int(d)
        if cols >= 512:        # >=80% lane efficiency after padding to 128s
            break
    return total_n // cols, cols


def _default_num_shards():
    """2 only where two TensorCores are visible to one program."""
    try:
        kind = jax.devices()[0].device_kind.lower()
    except Exception:
        return 1
    return 2 if any(tok in kind for tok in ("v4", "v5p", "v7", "7x")) else 1


def focal_loss(inputs, targets, alpha=ALPHA, gamma=GAMMA, *,
               binary_targets=None, num_shards=None,
               max_block_bytes=MAX_BLOCK_BYTES):
    """Focal loss forward pass. `inputs` are probabilities in (0, 1).

    Inputs/targets may be any float dtype (bf16 recommended) and targets may
    additionally be int8/bool; everything is cast to f32 inside the kernel.
    """
    assert inputs.shape == targets.shape
    total_n = int(inputs.size)

    if binary_targets is None:
        binary_targets = bool(jnp.issubdtype(targets.dtype, jnp.integer)
                              or targets.dtype == jnp.bool_)

    rows, cols = _view_2d(total_n, inputs.shape)
    x2 = inputs.reshape(rows, cols)    # contiguous reshape -> bitcast, no copy
    t2 = targets.reshape(rows, cols)

    # Block sizing: ~max_block_bytes of combined input bytes per pipeline step.
    bytes_per_row = cols * (x2.dtype.itemsize + t2.dtype.itemsize)
    budget_rows = max(int(max_block_bytes) // bytes_per_row, 1)
    if budget_rows >= rows:
        block_rows = rows
    else:
        block_rows = (budget_rows // 32) * 32   # keep bf16/int8 sublane packing aligned
        if block_rows == 0:
            block_rows = max((budget_rows // 8) * 8, 8)
        block_rows = min(block_rows, rows)

    nblocks = pl.cdiv(rows, block_rows)
    if num_shards is None:
        num_shards = _default_num_shards()
    num_shards = max(1, min(int(num_shards), int(nblocks)))
    steps = pl.cdiv(nblocks, num_shards)

    has_phantom = (num_shards * steps) != nblocks
    tail_rows = rows - (nblocks - 1) * block_rows   # == block_rows if regular

    if has_phantom:
        def in_map(s, i):
            # Clamp so the DMA never targets a block index past the array;
            # the kernel skips accumulation for those phantom steps.
            return (jnp.minimum(s * steps + i, nblocks - 1), 0)
    else:
        def in_map(s, i):
            return (s * steps + i, 0)

    kernel = functools.partial(
        _focal_loss_kernel,
        gamma=float(gamma),
        binary_targets=bool(binary_targets),
        steps_per_shard=int(steps),
        nblocks=int(nblocks),
        tail_rows=int(tail_rows),
        block_rows=int(block_rows),
        has_phantom=bool(has_phantom),
    )

    # Double-buffered input blocks (~2 * max_block_bytes) plus headroom; 32 MiB
    # is safe on every generation (v5e/v6e physical 128 MiB, v7x 64 MiB).
    vmem_limit = int(max(32 * 1024 * 1024,
                         2 * int(max_block_bytes) + 8 * 1024 * 1024))

    partials = pl.pallas_call(
        kernel,
        out_shape=jax.ShapeDtypeStruct((num_shards, 1, cols), jnp.float32),
        grid_spec=pltpu.PrefetchScalarGridSpec(
            num_scalar_prefetch=0,
            grid=(num_shards, steps),
            in_specs=[
                pl.BlockSpec((block_rows, cols), in_map),
                pl.BlockSpec((block_rows, cols), in_map),
            ],
            out_specs=pl.BlockSpec((1, 1, cols), lambda s, i: (s, 0, 0)),
        ),
        compiler_params=pltpu.CompilerParams(
            dimension_semantics=("parallel", "arbitrary"),
            vmem_limit_bytes=vmem_limit,
        ),
    )(x2, t2)

    # Tiny epilogue: one cross-lane sum over num_shards*cols partials, then the
    # hoisted alpha scale and mean divisor.
    return (jnp.float32(alpha) * jnp.sum(partials)) / jnp.float32(total_n)


def focal_loss_ref(inputs, targets, alpha=ALPHA, gamma=GAMMA):
    p = inputs.astype(jnp.float32)
    t = targets.astype(jnp.float32)
    log_p = jnp.maximum(jnp.log(p), -100.0)
    log_1mp = jnp.maximum(jnp.log(1.0 - p), -100.0)
    bce = -(t * log_p + (1.0 - t) * log_1mp)
    pt = jnp.exp(-bce)
    return jnp.mean(alpha * (1.0 - pt) ** gamma * bce)


if __name__ == "__main__":
    key = jax.random.PRNGKey(0)
    ks = jax.random.split(key, 8)

    def make(shape, kx, kt, x_dtype=jnp.float32, t_dtype=jnp.float32):
        p = jax.nn.sigmoid(jax.random.normal(kx, shape, dtype=jnp.float32))
        t = (jax.random.uniform(kt, shape) > 0.5)
        return p.astype(x_dtype), t.astype(t_dtype)

    def check(got, want, tag):
        jax.block_until_ready(got)
        assert jnp.allclose(got, want, rtol=1e-4, atol=1e-6), (tag, got, want)

    # 1) Lane-aligned NCHW, float targets (general / exact-spec path).
    x, t = make((2, 4, 16, 16), ks[0], ks[1])
    check(focal_loss(x, t), focal_loss_ref(x, t), "aligned")

    # 2) Ragged numel (not divisible by 128): zero-copy (R, C) trailing-dim
    #    view, no wrapper-side padding / concatenate.
    x, t = make((2, 3, 17, 19), ks[2], ks[3])
    check(focal_loss(x, t), focal_loss_ref(x, t), "ragged")

    # 3) Forced multi-block path: small blocks + 2 shards exercise the
    #    partial-tail mask (tail-step only) and the phantom shard step.
    x, t = make((2, 4, 300, 280), ks[4], ks[5])
    check(focal_loss(x, t, max_block_bytes=256 * 1024, num_shards=2),
          focal_loss_ref(x, t), "multiblock")

    # 4) Reduced-byte inputs: bf16 probabilities + int8 binary targets
    #    (auto-enables the 1-transcendental fast path).
    x, t = make((2, 4, 32, 32), ks[6], ks[7],
                x_dtype=jnp.bfloat16, t_dtype=jnp.int8)
    check(focal_loss(x, t), focal_loss_ref(x, t), "bf16_int8")

    print("KERNEL_OK")
</pallas_src>

<mosaic_0001>
module attributes {stable_mosaic.version = 11 : i64} {
  func.func @_focal_loss_kernel(%arg0: i32, %arg1: i32, %arg2: memref<16x128xf32, #tpu.memory_space<vmem>>, %arg3: memref<16x128xf32, #tpu.memory_space<vmem>>, %arg4: memref<1x1x128xf32, #tpu.memory_space<vmem>>) attributes {dimension_semantics = [#tpu.dimension_semantics<parallel>, #tpu.dimension_semantics<arbitrary>], iteration_bounds = array<i64: 1, 1>, scalar_prefetch = 0 : i64, scratch_operands = 0 : i64, tpu.core_type = #tpu.core_type<tc>, window_params = [{transform_indices = @transform_0, window_bounds = array<i64: 16, 128>}, {transform_indices = @transform_1, window_bounds = array<i64: 16, 128>}, {transform_indices = @transform_2, window_bounds = array<i64: 1, 1, 128>}]} {
    %c0_i32 = arith.constant 0 : i32
    %0 = arith.cmpi eq, %arg1, %c0_i32 : i32
    %1 = arith.extui %0 : i1 to i32
    %c0_i32_0 = arith.constant 0 : i32
    %2 = arith.cmpi ne, %1, %c0_i32_0 : i32
    scf.if %2 {
      %cst_17 = arith.constant 0.000000e+00 : f32
      %33 = vector.broadcast %cst_17 : f32 to vector<1x1x128xf32>
      %c0_18 = arith.constant 0 : index
      %c0_19 = arith.constant 0 : index
      %c0_20 = arith.constant 0 : index
      %34 = vector.load %arg4[%c0_18, %c0_19, %c0_20] : memref<1x1x128xf32, #tpu.memory_space<vmem>>, vector<1x1x128xf32>
      tpu.vector_store %arg4[%c0_18, %c0_19, %c0_20], %33 {strides = array<i32>} : memref<1x1x128xf32, #tpu.memory_space<vmem>>, vector<1x1x128xf32>,
    } else {
    }
    %c0 = arith.constant 0 : index
    %c0_1 = arith.constant 0 : index
    %3 = vector.load %arg2[%c0, %c0_1] : memref<16x128xf32, #tpu.memory_space<vmem>>, vector<16x128xf32>
    %c0_2 = arith.constant 0 : index
    %c0_3 = arith.constant 0 : index
    %4 = vector.load %arg3[%c0_2, %c0_3] : memref<16x128xf32, #tpu.memory_space<vmem>>, vector<16x128xf32>
    %5 = math.log %3 : vector<16x128xf32>
    %cst = arith.constant -1.000000e+02 : f32
    %6 = vector.broadcast %cst : f32 to vector<16x128xf32>
    %7 = arith.maximumf %5, %6 : vector<16x128xf32>
    %cst_4 = arith.constant 1.000000e+00 : f32
    %8 = vector.broadcast %cst_4 : f32 to vector<16x128xf32>
    %9 = arith.subf %8, %3 : vector<16x128xf32>
    %10 = math.log %9 : vector<16x128xf32>
    %cst_5 = arith.constant -1.000000e+02 : f32
    %11 = vector.broadcast %cst_5 : f32 to vector<16x128xf32>
    %12 = arith.maximumf %10, %11 : vector<16x128xf32>
    %13 = arith.mulf %4, %7 : vector<16x128xf32>
    %cst_6 = arith.constant 1.000000e+00 : f32
    %14 = vector.broadcast %cst_6 : f32 to vector<16x128xf32>
    %15 = arith.subf %14, %4 : vector<16x128xf32>
    %16 = arith.mulf %15, %12 : vector<16x128xf32>
    %17 = arith.addf %13, %16 : vector<16x128xf32>
    %cst_7 = arith.constant 0.000000e+00 : f32
    %18 = vector.broadcast %cst_7 : f32 to vector<16x128xf32>
    %19 = arith.subf %18, %17 : vector<16x128xf32>
    %cst_8 = arith.constant 0.000000e+00 : f32
    %20 = vector.broadcast %cst_8 : f32 to vector<16x128xf32>
    %21 = arith.subf %20, %19 : vector<16x128xf32>
    %22 = math.exp %21 : vector<16x128xf32>
    %cst_9 = arith.constant 1.000000e+00 : f32
    %23 = vector.broadcast %cst_9 : f32 to vector<16x128xf32>
    %24 = arith.subf %23, %22 : vector<16x128xf32>
    %25 = arith.mulf %24, %24 : vector<16x128xf32>
    %26 = arith.mulf %25, %19 : vector<16x128xf32>
    %c0_10 = arith.constant 0 : index
    %c0_11 = arith.constant 0 : index
    %c0_12 = arith.constant 0 : index
    %27 = vector.load %arg4[%c0_10, %c0_11, %c0_12] : memref<1x1x128xf32, #tpu.memory_space<vmem>>, vector<1x1x128xf32>
    %cst_13 = arith.constant dense<0.000000e+00> : vector<128xf32>
    %28 = vector.multi_reduction <add>, %26, %cst_13 [0] : vector<16x128xf32> to vector<128xf32>
    %29 = vector.shape_cast %28 : vector<128xf32> to vector<1x128xf32>
    %30 = vector.shape_cast %29 : vector<1x128xf32> to vector<1x1x128xf32>
    %31 = arith.addf %27, %30 : vector<1x1x128xf32>
    %c0_14 = arith.constant 0 : index
    %c0_15 = arith.constant 0 : index
    %c0_16 = arith.constant 0 : index
    %32 = vector.load %arg4[%c0_14, %c0_15, %c0_16] : memref<1x1x128xf32, #tpu.memory_space<vmem>>, vector<1x1x128xf32>
    tpu.vector_store %arg4[%c0_14, %c0_15, %c0_16], %31 {strides = array<i32>} : memref<1x1x128xf32, #tpu.memory_space<vmem>>, vector<1x1x128xf32>,
    return
  }
  func.func @transform_0(%arg0: i32, %arg1: i32) -> (i32, i32) {
    %c1_i32 = arith.constant 1 : i32
    %0 = arith.muli %arg0, %c1_i32 : i32
    %1 = arith.addi %0, %arg1 : i32
    %c0_i32 = arith.constant 0 : i32
    %c0_i32_0 = arith.constant 0 : i32
    return %1, %c0_i32 : i32, i32
  }
  func.func @transform_1(%arg0: i32, %arg1: i32) -> (i32, i32) {
    %c1_i32 = arith.constant 1 : i32
    %0 = arith.muli %arg0, %c1_i32 : i32
    %1 = arith.addi %0, %arg1 : i32
    %c0_i32 = arith.constant 0 : i32
    %c0_i32_0 = arith.constant 0 : i32
    return %1, %c0_i32 : i32, i32
  }
  func.func @transform_2(%arg0: i32, %arg1: i32) -> (i32, i32, i32) {
    %c0_i32 = arith.constant 0 : i32
    %c0_i32_0 = arith.constant 0 : i32
    %c0_i32_1 = arith.constant 0 : i32
    return %arg0, %c0_i32, %c0_i32_0 : i32, i32, i32
  }
}

</mosaic_0001>

<llo_original>
// kernel: tpu_custom_call.1
$region0: #{tpu_custom_call.1}
  #allocation0 [shape = 'u32[]', space=smem, size = 0x4, offset = 0x4, fixed_abs, tag = 'smem constant byte address 0x4 - core index']
  #allocation1 [shape = 'u32[72,128]{1,0:T(1,128)}', space=vmem, size = 0x9000, scoped, tag = 'internal scratch']
  %s0 = inlined_call_operand.hbm [shape: f32[16,128], index: 0, kind: input, shape index: {}]
  %s1 = inlined_call_operand.hbm [shape: f32[16,128], index: 1, kind: input, shape index: {}]
  %s2 = inlined_call_operand.hbm [shape: f32[1,1,128], index: 2, kind: output, shape index: {}]
  %s3 = sld [smem:[#allocation0]]
  $region30: #{tpu_custom_call.1} parent=0
    _
  %s5 = ssub.s32 1, %s3
  %s6 = scalar_select 0, %s5, %s3
  $region1: #{tpu_custom_call.1} parent=0
    #allocation2 [shape = 'u8[8192]{0}', space=vmem, size = 0x2000, scoped, tag = 'input window, operand 0, single buffered']
    #allocation3 [shape = 's32[1]{0}', space=sflag, size = 0x4, scoped, tag = 'scoped memory for tpu_custom_call.1']
    #allocation4 [shape = 's32[1]{0}', space=sflag, size = 0x4, scoped, tag = 'scoped memory for tpu_custom_call.1']
    #allocation5 [shape = 'u8[8192]{0}', space=vmem, size = 0x2000, scoped, tag = 'input window, operand 1, single buffered']
    #allocation6 [shape = 's32[1]{0}', space=sflag, size = 0x4, scoped, tag = 'scoped memory for tpu_custom_call.1']
    #allocation7 [shape = 'u8[512]{0}', space=vmem, size = 0x400, scoped, tag = 'output window, operand 0, single buffered']
    %7 = vsyncpa [#allocation3], 0
    %8 = vsyncpa [#allocation6], 0
    %9 = vsyncpa [#allocation4], 0
    // Predicated region
    $region2: #{tpu_custom_call.1} parent=1 // pred_check
      _
    $region3: #{tpu_custom_call.1} parent=1 // pred_check_branch
      %11 = sbr.rel (0) target = $region5
    $region4: #{tpu_custom_call.1} parent=1 // pred_region
      %s12 = sadd.s32 0, 0
      %s13 = smul.u32 2, %s12
      %15 = vsyncadd [#allocation3], 0
      %s16 = smul.addr %s13, 8
      %s17 = scalar_lea.hbm %s0, %s16
      %s18 = sshll.u32 %s17, 4
      %s19 = int_to_ptr.hbm [resolvable:$true] %s18
      %s20 = sshll.u32 [#allocation2], 4
      %s21 = int_to_ptr.vmem [resolvable:$true] %s20
      %26 = dma.hbm_to_vmem [thread:$0]  %s19, 256, %s21, [#allocation3], 128, 128, 8
    $region5: #{tpu_custom_call.1} parent=1 // pred_fallthru
      _
    // Predicated region
    $region6: #{tpu_custom_call.1} parent=1 // pred_check
      _
    $region7: #{tpu_custom_call.1} parent=1 // pred_check_branch
      %28 = sbr.rel (0) target = $region9
    $region8: #{tpu_custom_call.1} parent=1 // pred_region
      %s29 = sadd.s32 0, 0
      %s30 = smul.u32 2, %s29
      %32 = vsyncadd [#allocation6], 0
      %s33 = smul.addr %s30, 8
      %s34 = scalar_lea.hbm %s1, %s33
      %s35 = sshll.u32 %s34, 4
      %s36 = int_to_ptr.hbm [resolvable:$true] %s35
      %s37 = sshll.u32 [#allocation5], 4
      %s38 = int_to_ptr.vmem [resolvable:$true] %s37
      %43 = dma.hbm_to_vmem [thread:$0]  %s36, 256, %s38, [#allocation6], 128, 128, 8
    $region9: #{tpu_custom_call.1} parent=1 // pred_fallthru
      _
    // Predicated region
    $region10: #{tpu_custom_call.1} parent=1 // pred_check
      _
    $region11: #{tpu_custom_call.1} parent=1 // pred_check_branch
      %45 = sbr.rel (0) target = $region13
    $region12: #{tpu_custom_call.1} parent=1 // pred_region
      %47 = dma.done [#allocation3], 256
    $region13: #{tpu_custom_call.1} parent=1 // pred_fallthru
      _
    // Predicated region
    $region14: #{tpu_custom_call.1} parent=1 // pred_check
      _
    $region15: #{tpu_custom_call.1} parent=1 // pred_check_branch
      %49 = sbr.rel (0) target = $region17
    $region16: #{tpu_custom_call.1} parent=1 // pred_region
      %51 = dma.done [#allocation6], 256
    $region17: #{tpu_custom_call.1} parent=1 // pred_fallthru
      _
    %s52 = sadd.s32 0, 0
    %s53 = smul.u32 2, %s52
    %s54 = sadd.s32 0, 0
    %s55 = smul.u32 2, %s54
    %p56 = scmp.eq.s32.totalorder 0, 0
    // Predicated region
    $region18: #{tpu_custom_call.1} parent=1 // pred_check
      %p57 = pneg %p56
    $region19: #{tpu_custom_call.1} parent=1 // pred_check_branch
      %59 = sbr.rel (%p57) target = $region21
    $region20: #{tpu_custom_call.1} parent=1 // pred_region
      %60 = vst [vmem:[#allocation7] sm:$0x1] 0.0
    $region21: #{tpu_custom_call.1} parent=1 // pred_fallthru
      _
    %v61 = vld [vmem:[#allocation2] sm:$0xff]
    %v62 = vld [vmem:[#allocation2 + $0x8] sm:$0xff]
    %v63 = vld [vmem:[#allocation5] sm:$0xff]
    %v64 = vld [vmem:[#allocation5 + $0x8] sm:$0xff]
    %v65 = vlog2.pop %v61
    %v66 = vmul.f32 %v65, 0.6931472
    %v67 = vlog2.pop %v62
    %v68 = vmul.f32 %v67, 0.6931472
    %v69 = vmax.f32 %v66, -100.0
    %v70 = vmax.f32 %v68, -100.0
    %v71 = vsub.f32 1.0, %v61
    %v72 = vsub.f32 1.0, %v62
    %v73 = vlog2.pop %v71
    %v74 = vmul.f32 %v73, 0.6931472
    %v75 = vlog2.pop %v72
    %v76 = vmul.f32 %v75, 0.6931472
    %v77 = vmax.f32 %v74, -100.0
    %v78 = vmax.f32 %v76, -100.0
    %v79 = vmul.f32 %v63, %v69
    %v80 = vmul.f32 %v64, %v70
    %v81 = vsub.f32 1.0, %v63
    %v82 = vsub.f32 1.0, %v64
    %v83 = vmul.f32 %v81, %v77
    %v84 = vmul.f32 %v82, %v78
    %v85 = vadd.f32 %v79, %v83
    %v86 = vadd.f32 %v80, %v84
    %v87 = vsub.f32 0.0, %v85
    %v88 = vsub.f32 0.0, %v86
    %v89 = vsub.f32 0.0, %v87
    %v90 = vsub.f32 0.0, %v88
    %v91 = vmul.f32 %v89, 1.442695
    %v92 = vpow.pop %v91
    %v93 = vmul.f32 %v90, 1.442695
    %v94 = vpow.pop %v93
    %v95 = vsub.f32 1.0, %v92
    %v96 = vsub.f32 1.0, %v94
    %v97 = vmul.f32 %v95, %v95
    %v98 = vmul.f32 %v96, %v96
    %v99 = vmul.f32 %v97, %v87
    %v100 = vmul.f32 %v98, %v88
    %v101 = vld [vmem:[#allocation7] sm:$0x1]
    %v102 = vadd.f32 %v99, %v100
    %v103 = vrot.slane %v102, 4
    %v104 = vadd.f32 %v102, %v103
    %v105 = vrot.slane %v104, 2
    %v106 = vadd.f32 %v104, %v105
    %v107 = vrot.slane %v106, 1
    %v108 = vadd.f32 %v106, %v107
    %v109 = vadd.f32 %v101, %v108
    %110 = vst [vmem:[#allocation7] sm:$0x1] %v109
    // Predicated region
    $region22: #{tpu_custom_call.1} parent=1 // pred_check
      _
    $region23: #{tpu_custom_call.1} parent=1 // pred_check_branch
      %112 = sbr.rel (0) target = $region25
    $region24: #{tpu_custom_call.1} parent=1 // pred_region
      %114 = vsyncadd [#allocation4], 0
      %s116 = sshll.u32 [#allocation7], 4
      %s117 = int_to_ptr.vmem [resolvable:$true] %s116
      %s118 = sshll.u32 %s2, 4
      %s119 = int_to_ptr.hbm [resolvable:$true] %s118
      %121 = dma.vmem_to_hbm [thread:$0]  %s117, 16, %s119, [#allocation4]
    $region25: #{tpu_custom_call.1} parent=1 // pred_fallthru
      _
    // Predicated region
    $region26: #{tpu_custom_call.1} parent=1 // pred_check
      _
    $region27: #{tpu_custom_call.1} parent=1 // pred_check_branch
      %123 = sbr.rel (0) target = $region29
    $region28: #{tpu_custom_call.1} parent=1 // pred_region
      %125 = dma.done [#allocation4], 16
    $region29: #{tpu_custom_call.1} parent=1 // pred_fallthru
      _
    %126 = vsyncpa [#allocation3], 1
    %127 = vsyncpa [#allocation6], 1
    %128 = vsyncpa [#allocation4], 1

</llo_original>
